<compile_context>
chip_gen: v7x
topology: tpu7x:2x2x1
jax: 0.10.0
libtpu: 0.0.40
codegen_flags: <defaults>
</compile_context>

<pallas_src>
import math

import jax
import jax.numpy as jnp
from jax.experimental import pallas as pl
from jax.experimental.pallas import tpu as pltpu


def _round_up(x, m):
    return ((x + m - 1) // m) * m


def _pad_axis(a, target, axis):
    pad = target - a.shape[axis]
    if pad == 0:
        return a
    widths = [(0, 0)] * a.ndim
    widths[axis] = (0, pad)
    return jnp.pad(a, widths)


def _mlp_kernel(x_ref, w1_ref, b1_ref, w2_ref, b2_ref, o_ref, acc_ref):
    # x_ref:  (tile_m, C_in)     w1_ref: (C_in, tile_h)   b1_ref: (1, tile_h)  [f32]
    # w2_ref: (tile_h, C_out)    b2_ref: (1, C_out)       [f32]
    # o_ref:  (tile_m, C_out)    acc_ref: (tile_m, C_out) f32 scratch
    h_idx = pl.program_id(1)

    @pl.when(h_idx == 0)
    def _():
        acc_ref[...] = jnp.zeros_like(acc_ref)

    # fc1 partial over this hidden tile: native-dtype operands on the MXU,
    # f32 accumulation via preferred_element_type.
    h = jnp.dot(x_ref[...], w1_ref[...], preferred_element_type=jnp.float32)
    h = h + b1_ref[...]

    # exact GELU (PyTorch nn.GELU default): 0.5*x*(1+erf(x/sqrt(2))), f32 epilogue.
    h = 0.5 * h * (1.0 + jax.lax.erf(h * (1.0 / math.sqrt(2.0))))

    # dropout p=0.0 -> identity (nothing to do)

    # fc2 partial: cast activation back to the operand dtype (bf16 fast path when
    # weights are bf16), accumulate in f32.
    acc_ref[...] += jnp.dot(h.astype(w2_ref.dtype), w2_ref[...],
                            preferred_element_type=jnp.float32)

    @pl.when(h_idx == pl.num_programs(1) - 1)
    def _():
        o_ref[...] = (acc_ref[...] + b2_ref[...]).astype(o_ref.dtype)


def mlp_pallas(x, w1, b1, w2, b2, *, tile_m=256, tile_h=512):
    """x: (B, N, C_in) -> (B, N, C_out). Weights stored as (in, hidden)/(hidden, out)."""
    B, N, C_in = x.shape
    H = w1.shape[1]
    C_out = w2.shape[1]
    M = B * N

    # Lane-dense padding: all feature dims to multiples of 128, rows to tile_m.
    C_in_p = _round_up(C_in, 128)
    H_p = _round_up(H, 128)
    C_out_p = _round_up(C_out, 128)

    tile_h = min(tile_h, H_p)
    tile_h = math.gcd(tile_h, H_p)     # ensure tile_h | H_p (both multiples of 128)
    M_p = _round_up(M, tile_m)

    x2d = _pad_axis(_pad_axis(x.reshape(M, C_in), C_in_p, 1), M_p, 0)
    w1_p = _pad_axis(_pad_axis(w1, C_in_p, 0), H_p, 1)
    w2_p = _pad_axis(_pad_axis(w2, H_p, 0), C_out_p, 1)
    # Biases kept f32 (epilogue math is f32 anyway; avoids sub-minimum bf16 sublane tiles).
    b1_p = _pad_axis(b1.astype(jnp.float32).reshape(1, H), H_p, 1)
    b2_p = _pad_axis(b2.astype(jnp.float32).reshape(1, C_out), C_out_p, 1)

    grid = (M_p // tile_m, H_p // tile_h)

    def _nbytes(a):
        return a.size * a.dtype.itemsize

    out_bytes = M_p * C_out_p * jnp.dtype(x.dtype).itemsize
    cost = pl.CostEstimate(
        flops=2 * M_p * H_p * (C_in_p + C_out_p),
        transcendentals=M_p * H_p,
        bytes_accessed=(_nbytes(x2d) + _nbytes(w1_p) + _nbytes(w2_p)
                        + _nbytes(b1_p) + _nbytes(b2_p) + out_bytes),
    )

    out2d = pl.pallas_call(
        _mlp_kernel,
        out_shape=jax.ShapeDtypeStruct((M_p, C_out_p), x.dtype),
        grid=grid,
        in_specs=[
            pl.BlockSpec((tile_m, C_in_p), lambda i, h: (i, 0)),    # x rows
            pl.BlockSpec((C_in_p, tile_h), lambda i, h: (0, h)),    # W1 H-slab
            pl.BlockSpec((1, tile_h), lambda i, h: (0, h)),         # b1 H-slab
            pl.BlockSpec((tile_h, C_out_p), lambda i, h: (h, 0)),   # W2 H-slab
            pl.BlockSpec((1, C_out_p), lambda i, h: (0, 0)),        # b2 (invariant)
        ],
        out_specs=pl.BlockSpec((tile_m, C_out_p), lambda i, h: (i, 0)),
        scratch_shapes=[pltpu.VMEM((tile_m, C_out_p), jnp.float32)],
        compiler_params=pltpu.CompilerParams(
            dimension_semantics=("parallel", "arbitrary"),
            vmem_limit_bytes=64 * 1024 * 1024,
        ),
        cost_estimate=cost,
    )(x2d, w1_p, b1_p, w2_p, b2_p)

    return out2d[:M, :C_out].reshape(B, N, C_out)


def _init_linear(key, fan_in, fan_out, dtype=jnp.float32):
    # Mimics torch.nn.Linear default init (uniform +-1/sqrt(fan_in)).
    kw, kb = jax.random.split(key)
    bound = 1.0 / math.sqrt(fan_in)
    w = jax.random.uniform(kw, (fan_in, fan_out), dtype, -bound, bound)
    b = jax.random.uniform(kb, (fan_out,), dtype, -bound, bound)
    return w, b


def mlp_reference(x, w1, b1, w2, b2):
    h = jnp.einsum("bnc,ch->bnh", x, w1) + b1
    h = 0.5 * h * (1.0 + jax.lax.erf(h / math.sqrt(2.0)))
    return jnp.einsum("bnh,ho->bno", h, w2) + b2


if __name__ == "__main__":
    # Small shapes: batch=2, seq=8 tokens, in_features=16, hidden_features=32,
    # out_features defaults to in_features (16).
    B, N = 2, 8
    in_features = 16
    hidden_features = 32
    out_features = in_features

    key = jax.random.PRNGKey(0)
    kx, k1, k2 = jax.random.split(key, 3)

    x = jax.random.normal(kx, (B, N, in_features), jnp.float32)
    w1, b1 = _init_linear(k1, in_features, hidden_features)
    w2, b2 = _init_linear(k2, hidden_features, out_features)

    out = mlp_pallas(x, w1, b1, w2, b2)
    out = jax.block_until_ready(out)

    ref = mlp_reference(x, w1, b1, w2, b2)
    assert out.shape == (B, N, out_features)
    assert jnp.allclose(out, ref, atol=1e-5, rtol=1e-5), "mismatch vs reference"

    print("KERNEL_OK")
</pallas_src>

<mosaic_0001>
module attributes {stable_mosaic.version = 11 : i64} {
  func.func @_mlp_kernel(%arg0: i32, %arg1: i32, %arg2: memref<256x128xf32, #tpu.memory_space<vmem>>, %arg3: memref<128x128xf32, #tpu.memory_space<vmem>>, %arg4: memref<1x128xf32, #tpu.memory_space<vmem>>, %arg5: memref<128x128xf32, #tpu.memory_space<vmem>>, %arg6: memref<1x128xf32, #tpu.memory_space<vmem>>, %arg7: memref<256x128xf32, #tpu.memory_space<vmem>>, %arg8: memref<256x128xf32, #tpu.memory_space<vmem>>) attributes {dimension_semantics = [#tpu.dimension_semantics<parallel>, #tpu.dimension_semantics<arbitrary>], iteration_bounds = array<i64: 1, 1>, scalar_prefetch = 0 : i64, scratch_operands = 1 : i64, tpu.core_type = #tpu.core_type<tc>, window_params = [{transform_indices = @transform_0, window_bounds = array<i64: 256, 128>}, {transform_indices = @transform_1, window_bounds = array<i64: 128, 128>}, {transform_indices = @transform_2, window_bounds = array<i64: 1, 128>}, {transform_indices = @transform_3, window_bounds = array<i64: 128, 128>}, {pipeline_mode = #tpu.pipeline_mode<synchronous>, transform_indices = @transform_4, window_bounds = array<i64: 1, 128>}, {transform_indices = @transform_5, window_bounds = array<i64: 256, 128>}]} {
    %c0_i32 = arith.constant 0 : i32
    %0 = arith.cmpi eq, %arg1, %c0_i32 : i32
    %1 = arith.extui %0 : i1 to i32
    %c0_i32_0 = arith.constant 0 : i32
    %2 = arith.cmpi ne, %1, %c0_i32_0 : i32
    scf.if %2 {
      %cst_18 = arith.constant 0.000000e+00 : f32
      %25 = vector.broadcast %cst_18 : f32 to vector<256x128xf32>
      %c0_19 = arith.constant 0 : index
      %c0_20 = arith.constant 0 : index
      %26 = vector.load %arg8[%c0_19, %c0_20] : memref<256x128xf32, #tpu.memory_space<vmem>>, vector<256x128xf32>
      tpu.vector_store %arg8[%c0_19, %c0_20], %25 {strides = array<i32>} : memref<256x128xf32, #tpu.memory_space<vmem>>, vector<256x128xf32>,
    } else {
    }
    %c0 = arith.constant 0 : index
    %c0_1 = arith.constant 0 : index
    %3 = vector.load %arg2[%c0, %c0_1] : memref<256x128xf32, #tpu.memory_space<vmem>>, vector<256x128xf32>
    %c0_2 = arith.constant 0 : index
    %c0_3 = arith.constant 0 : index
    %4 = vector.load %arg3[%c0_2, %c0_3] : memref<128x128xf32, #tpu.memory_space<vmem>>, vector<128x128xf32>
    %cst = arith.constant dense<0.000000e+00> : vector<256x128xf32>
    %5 = tpu.matmul %3, %4, %cst {dimension_numbers = #tpu.dot_dimension_numbers<[1], [0], [0], [1], [0, 0, 1, 1], [], []>} : vector<256x128xf32>, vector<128x128xf32>, vector<256x128xf32> -> vector<256x128xf32>
    %c0_4 = arith.constant 0 : index
    %c0_5 = arith.constant 0 : index
    %6 = vector.load %arg4[%c0_4, %c0_5] : memref<1x128xf32, #tpu.memory_space<vmem>>, vector<1x128xf32>
    %7 = vector.broadcast %6 : vector<1x128xf32> to vector<256x128xf32>
    %8 = arith.addf %5, %7 : vector<256x128xf32>
    %cst_6 = arith.constant 5.000000e-01 : f32
    %9 = vector.broadcast %cst_6 : f32 to vector<256x128xf32>
    %10 = arith.mulf %9, %8 : vector<256x128xf32>
    %cst_7 = arith.constant 0.707106769 : f32
    %11 = vector.broadcast %cst_7 : f32 to vector<256x128xf32>
    %12 = arith.mulf %8, %11 : vector<256x128xf32>
    %13 = math.erf %12 : vector<256x128xf32>
    %cst_8 = arith.constant 1.000000e+00 : f32
    %14 = vector.broadcast %cst_8 : f32 to vector<256x128xf32>
    %15 = arith.addf %14, %13 : vector<256x128xf32>
    %16 = arith.mulf %10, %15 : vector<256x128xf32>
    %c0_9 = arith.constant 0 : index
    %c0_10 = arith.constant 0 : index
    %17 = vector.load %arg8[%c0_9, %c0_10] : memref<256x128xf32, #tpu.memory_space<vmem>>, vector<256x128xf32>
    %c0_11 = arith.constant 0 : index
    %c0_12 = arith.constant 0 : index
    %18 = vector.load %arg5[%c0_11, %c0_12] : memref<128x128xf32, #tpu.memory_space<vmem>>, vector<128x128xf32>
    %cst_13 = arith.constant dense<0.000000e+00> : vector<256x128xf32>
    %19 = tpu.matmul %16, %18, %cst_13 {dimension_numbers = #tpu.dot_dimension_numbers<[1], [0], [0], [1], [0, 0, 1, 1], [], []>} : vector<256x128xf32>, vector<128x128xf32>, vector<256x128xf32> -> vector<256x128xf32>
    %20 = arith.addf %17, %19 : vector<256x128xf32>
    %c0_14 = arith.constant 0 : index
    %c0_15 = arith.constant 0 : index
    %21 = vector.load %arg8[%c0_14, %c0_15] : memref<256x128xf32, #tpu.memory_space<vmem>>, vector<256x128xf32>
    tpu.vector_store %arg8[%c0_14, %c0_15], %20 {strides = array<i32>} : memref<256x128xf32, #tpu.memory_space<vmem>>, vector<256x128xf32>,
    %c0_i32_16 = arith.constant 0 : i32
    %22 = arith.cmpi eq, %arg1, %c0_i32_16 : i32
    %23 = arith.extui %22 : i1 to i32
    %c0_i32_17 = arith.constant 0 : i32
    %24 = arith.cmpi ne, %23, %c0_i32_17 : i32
    scf.if %24 {
      %c0_18 = arith.constant 0 : index
      %c0_19 = arith.constant 0 : index
      %25 = vector.load %arg8[%c0_18, %c0_19] : memref<256x128xf32, #tpu.memory_space<vmem>>, vector<256x128xf32>
      %c0_20 = arith.constant 0 : index
      %c0_21 = arith.constant 0 : index
      %26 = vector.load %arg6[%c0_20, %c0_21] : memref<1x128xf32, #tpu.memory_space<vmem>>, vector<1x128xf32>
      %27 = vector.broadcast %26 : vector<1x128xf32> to vector<256x128xf32>
      %28 = arith.addf %25, %27 : vector<256x128xf32>
      %c0_22 = arith.constant 0 : index
      %c0_23 = arith.constant 0 : index
      %29 = vector.load %arg7[%c0_22, %c0_23] : memref<256x128xf32, #tpu.memory_space<vmem>>, vector<256x128xf32>
      tpu.vector_store %arg7[%c0_22, %c0_23], %28 {strides = array<i32>} : memref<256x128xf32, #tpu.memory_space<vmem>>, vector<256x128xf32>,
    } else {
    }
    return
  }
  func.func @transform_0(%arg0: i32, %arg1: i32) -> (i32, i32) {
    %c0_i32 = arith.constant 0 : i32
    %c0_i32_0 = arith.constant 0 : i32
    return %arg0, %c0_i32 : i32, i32
  }
  func.func @transform_1(%arg0: i32, %arg1: i32) -> (i32, i32) {
    %c0_i32 = arith.constant 0 : i32
    %c0_i32_0 = arith.constant 0 : i32
    return %c0_i32, %arg1 : i32, i32
  }
  func.func @transform_2(%arg0: i32, %arg1: i32) -> (i32, i32) {
    %c0_i32 = arith.constant 0 : i32
    %c0_i32_0 = arith.constant 0 : i32
    return %c0_i32, %arg1 : i32, i32
  }
  func.func @transform_3(%arg0: i32, %arg1: i32) -> (i32, i32) {
    %c0_i32 = arith.constant 0 : i32
    %c0_i32_0 = arith.constant 0 : i32
    return %arg1, %c0_i32 : i32, i32
  }
  func.func @transform_4(%arg0: i32, %arg1: i32) -> (i32, i32) {
    %c0_i32 = arith.constant 0 : i32
    %c0_i32_0 = arith.constant 0 : i32
    %c0_i32_1 = arith.constant 0 : i32
    return %c0_i32, %c0_i32_0 : i32, i32
  }
  func.func @transform_5(%arg0: i32, %arg1: i32) -> (i32, i32) {
    %c0_i32 = arith.constant 0 : i32
    %c0_i32_0 = arith.constant 0 : i32
    return %arg0, %c0_i32 : i32, i32
  }
}

</mosaic_0001>

<llo_original>
// kernel: tpu_custom_call.1
$region0: #{tpu_custom_call.1}
  #allocation0 [shape = 'u32[]', space=smem, size = 0x4, offset = 0x4, fixed_abs, tag = 'smem constant byte address 0x4 - core index']
  #allocation1 [shape = 'u32[144,128]{1,0:T(1,128)}', space=vmem, size = 0x12000, scoped, tag = 'internal scratch']
  #allocation2 [shape = 'f32[256,128]{1,0:T(8,128)}', space=vmem, size = 0x20000, scoped, tag = 'scratch operand']
  %s0 = inlined_call_operand.hbm [shape: f32[256,128], index: 0, kind: input, shape index: {}]
  %s1 = inlined_call_operand.hbm [shape: f32[128,128], index: 1, kind: input, shape index: {}]
  %s2 = inlined_call_operand.hbm [shape: f32[1,128], index: 2, kind: input, shape index: {}]
  %s3 = inlined_call_operand.hbm [shape: f32[128,128], index: 3, kind: input, shape index: {}]
  %s4 = inlined_call_operand.hbm [shape: f32[1,128], index: 4, kind: input, shape index: {}]
  %s5 = inlined_call_operand.hbm [shape: f32[256,128], index: 5, kind: output, shape index: {}]
  %s6 = sld [smem:[#allocation0]]
  $region58: #{tpu_custom_call.1} parent=0
    _
  %s8 = ssub.s32 1, %s6
  %s9 = scalar_select 0, %s8, %s6
  $region1: #{tpu_custom_call.1} parent=0
    #allocation3 [shape = 'u8[131072]{0}', space=vmem, size = 0x20000, scoped, tag = 'input window, operand 0, single buffered']
    #allocation4 [shape = 's32[1]{0}', space=sflag, size = 0x4, scoped, tag = 'scoped memory for tpu_custom_call.1']
    #allocation5 [shape = 's32[1]{0}', space=sflag, size = 0x4, scoped, tag = 'scoped memory for tpu_custom_call.1']
    #allocation6 [shape = 'u8[65536]{0}', space=vmem, size = 0x10000, scoped, tag = 'input window, operand 1, single buffered']
    #allocation7 [shape = 's32[1]{0}', space=sflag, size = 0x4, scoped, tag = 'scoped memory for tpu_custom_call.1']
    #allocation8 [shape = 'u8[512]{0}', space=vmem, size = 0x400, scoped, tag = 'input window, operand 2, single buffered']
    #allocation9 [shape = 'u8[65536]{0}', space=vmem, size = 0x10000, scoped, tag = 'input window, operand 3, single buffered']
    #allocation10 [shape = 's32[1]{0}', space=sflag, size = 0x4, scoped, tag = 'scoped memory for tpu_custom_call.1']
    #allocation11 [shape = 'u8[512]{0}', space=vmem, size = 0x400, scoped, tag = 'input window, operand 4, single buffered']
    #allocation12 [shape = 'u8[131072]{0}', space=vmem, size = 0x20000, scoped, tag = 'output window, operand 0, single buffered']
    %10 = vsyncpa [#allocation4], 0
    %11 = vsyncpa [#allocation7], 0
    %12 = vsyncpa [#allocation10], 0
    %13 = vsyncpa [#allocation5], 0
    // Predicated region
    $region2: #{tpu_custom_call.1} parent=1 // pred_check
      _
    $region3: #{tpu_custom_call.1} parent=1 // pred_check_branch
      %15 = sbr.rel (0) target = $region5
    $region4: #{tpu_custom_call.1} parent=1 // pred_region
      %s17 = ssub.s32 4096, 4096
      %18 = vsyncadd [#allocation4], %s17
      %s19 = sshll.u32 [#allocation3], 4
      %s20 = int_to_ptr.vmem [resolvable:$true] %s19
      %25 = dma.hbm_to_vmem [thread:$0]  %s0, 4096, %s20, [#allocation4], 128, 128, 8
    $region5: #{tpu_custom_call.1} parent=1 // pred_fallthru
      _
    // Predicated region
    $region6: #{tpu_custom_call.1} parent=1 // pred_check
      _
    $region7: #{tpu_custom_call.1} parent=1 // pred_check_branch
      %27 = sbr.rel (0) target = $region9
    $region8: #{tpu_custom_call.1} parent=1 // pred_region
      %s29 = ssub.s32 2048, 2048
      %30 = vsyncadd [#allocation7], %s29
      %s31 = sshll.u32 [#allocation6], 4
      %s32 = int_to_ptr.vmem [resolvable:$true] %s31
      %37 = dma.hbm_to_vmem [thread:$0]  %s1, 2048, %s32, [#allocation7], 128, 128, 8
    $region9: #{tpu_custom_call.1} parent=1 // pred_fallthru
      _
    // Predicated region
    $region10: #{tpu_custom_call.1} parent=1 // pred_check
      _
    $region11: #{tpu_custom_call.1} parent=1 // pred_check_branch
      %39 = sbr.rel (0) target = $region13
    $region12: #{tpu_custom_call.1} parent=1 // pred_region
      %s41 = ssub.s32 16, 16
      %42 = vsyncadd [#allocation7], %s41
      %s44 = sshll.u32 [#allocation8], 4
      %s45 = int_to_ptr.vmem [resolvable:$true] %s44
      %47 = dma.hbm_to_vmem [thread:$0]  %s2, 16, %s45, [#allocation7]
    $region13: #{tpu_custom_call.1} parent=1 // pred_fallthru
      _
    // Predicated region
    $region14: #{tpu_custom_call.1} parent=1 // pred_check
      _
    $region15: #{tpu_custom_call.1} parent=1 // pred_check_branch
      %49 = sbr.rel (0) target = $region17
    $region16: #{tpu_custom_call.1} parent=1 // pred_region
      %s51 = ssub.s32 2048, 2048
      %52 = vsyncadd [#allocation10], %s51
      %s53 = sshll.u32 [#allocation9], 4
      %s54 = int_to_ptr.vmem [resolvable:$true] %s53
      %59 = dma.hbm_to_vmem [thread:$0]  %s3, 2048, %s54, [#allocation10], 128, 128, 8
    $region17: #{tpu_custom_call.1} parent=1 // pred_fallthru
      _
    // Predicated region
    $region18: #{tpu_custom_call.1} parent=1 // pred_check
      _
    $region19: #{tpu_custom_call.1} parent=1 // pred_check_branch
      %61 = sbr.rel (0) target = $region21
    $region20: #{tpu_custom_call.1} parent=1 // pred_region
      %s63 = ssub.s32 16, 16
      %64 = vsyncadd [#allocation10], %s63
      %s66 = sshll.u32 [#allocation11], 4
      %s67 = int_to_ptr.vmem [resolvable:$true] %s66
      %69 = dma.hbm_to_vmem [thread:$0]  %s4, 16, %s67, [#allocation10]
    $region21: #{tpu_custom_call.1} parent=1 // pred_fallthru
      _
    // Predicated region
    $region22: #{tpu_custom_call.1} parent=1 // pred_check
      _
    $region23: #{tpu_custom_call.1} parent=1 // pred_check_branch
      %71 = sbr.rel (0) target = $region25
    $region24: #{tpu_custom_call.1} parent=1 // pred_region
      %72 = dma.done [#allocation4], 4096
    $region25: #{tpu_custom_call.1} parent=1 // pred_fallthru
      _
    // Predicated region
    $region26: #{tpu_custom_call.1} parent=1 // pred_check
      _
    $region27: #{tpu_custom_call.1} parent=1 // pred_check_branch
      %74 = sbr.rel (0) target = $region29
    $region28: #{tpu_custom_call.1} parent=1 // pred_region
      %75 = dma.done [#allocation7], 2048
    $region29: #{tpu_custom_call.1} parent=1 // pred_fallthru
      _
    // Predicated region
    $region30: #{tpu_custom_call.1} parent=1 // pred_check
      _
    $region31: #{tpu_custom_call.1} parent=1 // pred_check_branch
      %77 = sbr.rel (0) target = $region33
    $region32: #{tpu_custom_call.1} parent=1 // pred_region
      %78 = dma.done [#allocation7], 16
    $region33: #{tpu_custom_call.1} parent=1 // pred_fallthru
      _
    // Predicated region
    $region34: #{tpu_custom_call.1} parent=1 // pred_check
      _
    $region35: #{tpu_custom_call.1} parent=1 // pred_check_branch
      %80 = sbr.rel (0) target = $region37
    $region36: #{tpu_custom_call.1} parent=1 // pred_region
      %81 = dma.done [#allocation10], 2048
    $region37: #{tpu_custom_call.1} parent=1 // pred_fallthru
      _
    // Predicated region
    $region38: #{tpu_custom_call.1} parent=1 // pred_check
      _
    $region39: #{tpu_custom_call.1} parent=1 // pred_check_branch
      %83 = sbr.rel (0) target = $region41
    $region40: #{tpu_custom_call.1} parent=1 // pred_region
      %84 = dma.done [#allocation10], 16
    $region41: #{tpu_custom_call.1} parent=1 // pred_fallthru
      _
    %p85 = scmp.eq.s32.totalorder 0, 0
    // Predicated region
    $region42: #{tpu_custom_call.1} parent=1 // pred_check
      %p86 = pneg %p85
    $region43: #{tpu_custom_call.1} parent=1 // pred_check_branch
      %88 = sbr.rel (%p86) target = $region45
    $region44: #{tpu_custom_call.1} parent=1 // pred_region
      %89 = vst [vmem:[#allocation2] sm:$0xff] 0.0
      %90 = vst [vmem:[#allocation2 + $0x8] sm:$0xff] 0.0
      %91 = vst [vmem:[#allocation2 + $0x10] sm:$0xff] 0.0
      %92 = vst [vmem:[#allocation2 + $0x18] sm:$0xff] 0.0
      %93 = vst [vmem:[#allocation2 + $0x20] sm:$0xff] 0.0
      %94 = vst [vmem:[#allocation2 + $0x28] sm:$0xff] 0.0
      %95 = vst [vmem:[#allocation2 + $0x30] sm:$0xff] 0.0
      %96 = vst [vmem:[#allocation2 + $0x38] sm:$0xff] 0.0
      %97 = vst [vmem:[#allocation2 + $0x40] sm:$0xff] 0.0
      %98 = vst [vmem:[#allocation2 + $0x48] sm:$0xff] 0.0
      %99 = vst [vmem:[#allocation2 + $0x50] sm:$0xff] 0.0
      %100 = vst [vmem:[#allocation2 + $0x58] sm:$0xff] 0.0
      %101 = vst [vmem:[#allocation2 + $0x60] sm:$0xff] 0.0
      %102 = vst [vmem:[#allocation2 + $0x68] sm:$0xff] 0.0
      %103 = vst [vmem:[#allocation2 + $0x70] sm:$0xff] 0.0
      %104 = vst [vmem:[#allocation2 + $0x78] sm:$0xff] 0.0
      %105 = vst [vmem:[#allocation2 + $0x80] sm:$0xff] 0.0
      %106 = vst [vmem:[#allocation2 + $0x88] sm:$0xff] 0.0
      %107 = vst [vmem:[#allocation2 + $0x90] sm:$0xff] 0.0
      %108 = vst [vmem:[#allocation2 + $0x98] sm:$0xff] 0.0
      %109 = vst [vmem:[#allocation2 + $0xa0] sm:$0xff] 0.0
      %110 = vst [vmem:[#allocation2 + $0xa8] sm:$0xff] 0.0
      %111 = vst [vmem:[#allocation2 + $0xb0] sm:$0xff] 0.0
      %112 = vst [vmem:[#allocation2 + $0xb8] sm:$0xff] 0.0
      %113 = vst [vmem:[#allocation2 + $0xc0] sm:$0xff] 0.0
      %114 = vst [vmem:[#allocation2 + $0xc8] sm:$0xff] 0.0
      %115 = vst [vmem:[#allocation2 + $0xd0] sm:$0xff] 0.0
      %116 = vst [vmem:[#allocation2 + $0xd8] sm:$0xff] 0.0
      %117 = vst [vmem:[#allocation2 + $0xe0] sm:$0xff] 0.0
      %118 = vst [vmem:[#allocation2 + $0xe8] sm:$0xff] 0.0
      %119 = vst [vmem:[#allocation2 + $0xf0] sm:$0xff] 0.0
      %120 = vst [vmem:[#allocation2 + $0xf8] sm:$0xff] 0.0
    $region45: #{tpu_custom_call.1} parent=1 // pred_fallthru
      _
    %v121 = vld [vmem:[#allocation3] sm:$0xff]
    %v122 = vld [vmem:[#allocation3 + $0x8] sm:$0xff]
    %v123 = vld [vmem:[#allocation3 + $0x10] sm:$0xff]
    %v124 = vld [vmem:[#allocation3 + $0x18] sm:$0xff]
    %v125 = vld [vmem:[#allocation3 + $0x20] sm:$0xff]
    %v126 = vld [vmem:[#allocation3 + $0x28] sm:$0xff]
    %v127 = vld [vmem:[#allocation3 + $0x30] sm:$0xff]
    %v128 = vld [vmem:[#allocation3 + $0x38] sm:$0xff]
    %v129 = vld [vmem:[#allocation3 + $0x40] sm:$0xff]
    %v130 = vld [vmem:[#allocation3 + $0x48] sm:$0xff]
    %v131 = vld [vmem:[#allocation3 + $0x50] sm:$0xff]
    %v132 = vld [vmem:[#allocation3 + $0x58] sm:$0xff]
    %v133 = vld [vmem:[#allocation3 + $0x60] sm:$0xff]
    %v134 = vld [vmem:[#allocation3 + $0x68] sm:$0xff]
    %v135 = vld [vmem:[#allocation3 + $0x70] sm:$0xff]
    %v136 = vld [vmem:[#allocation3 + $0x78] sm:$0xff]
    %v137 = vld [vmem:[#allocation3 + $0x80] sm:$0xff]
    %v138 = vld [vmem:[#allocation3 + $0x88] sm:$0xff]
    %v139 = vld [vmem:[#allocation3 + $0x90] sm:$0xff]
    %v140 = vld [vmem:[#allocation3 + $0x98] sm:$0xff]
    %v141 = vld [vmem:[#allocation3 + $0xa0] sm:$0xff]
    %v142 = vld [vmem:[#allocation3 + $0xa8] sm:$0xff]
    %v143 = vld [vmem:[#allocation3 + $0xb0] sm:$0xff]
    %v144 = vld [vmem:[#allocation3 + $0xb8] sm:$0xff]
    %v145 = vld [vmem:[#allocation3 + $0xc0] sm:$0xff]
    %v146 = vld [vmem:[#allocation3 + $0xc8] sm:$0xff]
    %v147 = vld [vmem:[#allocation3 + $0xd0] sm:$0xff]
    %v148 = vld [vmem:[#allocation3 + $0xd8] sm:$0xff]
    %v149 = vld [vmem:[#allocation3 + $0xe0] sm:$0xff]
    %v150 = vld [vmem:[#allocation3 + $0xe8] sm:$0xff]
    %v151 = vld [vmem:[#allocation3 + $0xf0] sm:$0xff]
    %v152 = vld [vmem:[#allocation3 + $0xf8] sm:$0xff]
    %v153 = vld [vmem:[#allocation6] sm:$0xff]
    %v154 = vld [vmem:[#allocation6 + $0x8] sm:$0xff]
    %v155 = vld [vmem:[#allocation6 + $0x10] sm:$0xff]
    %v156 = vld [vmem:[#allocation6 + $0x18] sm:$0xff]
    %v157 = vld [vmem:[#allocation6 + $0x20] sm:$0xff]
    %v158 = vld [vmem:[#allocation6 + $0x28] sm:$0xff]
    %v159 = vld [vmem:[#allocation6 + $0x30] sm:$0xff]
    %v160 = vld [vmem:[#allocation6 + $0x38] sm:$0xff]
    %v161 = vld [vmem:[#allocation6 + $0x40] sm:$0xff]
    %v162 = vld [vmem:[#allocation6 + $0x48] sm:$0xff]
    %v163 = vld [vmem:[#allocation6 + $0x50] sm:$0xff]
    %v164 = vld [vmem:[#allocation6 + $0x58] sm:$0xff]
    %v165 = vld [vmem:[#allocation6 + $0x60] sm:$0xff]
    %v166 = vld [vmem:[#allocation6 + $0x68] sm:$0xff]
    %v167 = vld [vmem:[#allocation6 + $0x70] sm:$0xff]
    %v168 = vld [vmem:[#allocation6 + $0x78] sm:$0xff]
    %v169 = vld [vmem:[#allocation8] sm:$0x1]
    %v171 = vlaneseq
    %v172 = vshrl.u32 %v171, 7
    %v173 = vsub.s32 0, %v172
    %v174 = vrot.slane %v169, %v173
    %176 = vmatprep.subr.mxu0 0.0
    %177 = vmatpush1.msra.mxu0 %v153
    %178 = vmatprep.subr.mxu0 0.0
    %179 = vmatpush1.msra.mxu0 %v154
    %180 = vmatprep.subr.mxu0 0.0
    %181 = vmatpush1.msra.mxu0 %v155
    %182 = vmatprep.subr.mxu0 0.0
    %183 = vmatpush1.msra.mxu0 %v156
    %184 = vmatprep.subr.mxu0 0.0
    %185 = vmatpush1.msra.mxu0 %v157
    %186 = vmatprep.subr.mxu0 0.0
    %187 = vmatpush1.msra.mxu0 %v158
    %188 = vmatprep.subr.mxu0 0.0
    %189 = vmatpush1.msra.mxu0 %v159
    %190 = vmatprep.subr.mxu0 0.0
    %191 = vmatpush1.msra.mxu0 %v160
    %192 = vmatprep.subr.mxu0 0.0
    %193 = vmatpush1.msra.mxu0 %v161
    %194 = vmatprep.subr.mxu0 0.0
    %195 = vmatpush1.msra.mxu0 %v162
    %196 = vmatprep.subr.mxu0 0.0
    %197 = vmatpush1.msra.mxu0 %v163
    %198 = vmatprep.subr.mxu0 0.0
    %199 = vmatpush1.msra.mxu0 %v164
    %200 = vmatprep.subr.mxu0 0.0
    %201 = vmatpush1.msra.mxu0 %v165
    %202 = vmatprep.subr.mxu0 0.0
    %203 = vmatpush1.msra.mxu0 %v166
    %204 = vmatprep.subr.mxu0 0.0
    %205 = vmatpush1.msra.mxu0 %v167
    %206 = vmatprep.subr.mxu0 0.0
    %207 = vmatpush1.msra.mxu0 %v168
    %208 = vmatprep.subr.mxu0 0.0
    %209 = vmatpush1.msra.mxu0 0.0
    %210 = vmatprep.subr.mxu0 0.0
    %211 = vmatpush1.msra.mxu0 0.0
    %212 = vmatprep.subr.mxu0 0.0
    %213 = vmatpush1.msra.mxu0 0.0
    %214 = vmatprep.subr.mxu0 0.0
    %215 = vmatpush1.msra.mxu0 0.0
    %216 = vmatprep.subr.mxu0 0.0
    %217 = vmatpush1.msra.mxu0 0.0
    %218 = vmatprep.subr.mxu0 0.0
    %219 = vmatpush1.msra.mxu0 0.0
    %220 = vmatprep.subr.mxu0 0.0
    %221 = vmatpush1.msra.mxu0 0.0
    %222 = vmatprep.subr.mxu0 0.0
    %223 = vmatpush1.msra.mxu0 0.0
    %224 = vmatprep.subr.mxu0 0.0
    %225 = vmatpush1.msra.mxu0 0.0
    %226 = vmatprep.subr.mxu0 0.0
    %227 = vmatpush1.msra.mxu0 0.0
    %228 = vmatprep.subr.mxu0 0.0
    %229 = vmatpush1.msra.mxu0 0.0
    %230 = vmatprep.subr.mxu0 0.0
    %231 = vmatpush1.msra.mxu0 0.0
    %232 = vmatprep.subr.mxu0 0.0
    %233 = vmatpush1.msra.mxu0 0.0
    %234 = vmatprep.subr.mxu0 0.0
    %235 = vmatpush1.msra.mxu0 0.0
    %236 = vmatprep.subr.mxu0 0.0
    %237 = vmatpush1.msra.mxu0 0.0
    %238 = vmatprep.subr.mxu0 0.0
    %239 = vmatpush1.msra.mxu0 0.0
    %240 = vmatprep.mubr.f32.mxu0 0.0
    %241 = vmatmul.mubr.f32.gmra.mrb[0].mxu0 %v121
    %v242 = vpop.f32.mrb[0].mxu0
    %v243 = vadd.f32 %v174, %v242
    %v244 = vpop.f32.mrb[0].mxu0
    %245 = vmatprep.mubr.f32.mxu0 0.0
    %246 = vmatmul.mubr.f32.gmra.mrb[0].mxu0 %v122
    %v247 = vpop.f32.mrb[0].mxu0
    %v248 = vadd.f32 %v174, %v247
    %v249 = vpop.f32.mrb[0].mxu0
    %250 = vmatprep.mubr.f32.mxu0 0.0
    %251 = vmatmul.mubr.f32.gmra.mrb[0].mxu0 %v123
    %v252 = vpop.f32.mrb[0].mxu0
    %v253 = vadd.f32 %v174, %v252
    %v254 = vpop.f32.mrb[0].mxu0
    %255 = vmatprep.mubr.f32.mxu0 0.0
    %256 = vmatmul.mubr.f32.gmra.mrb[0].mxu0 %v124
    %v257 = vpop.f32.mrb[0].mxu0
    %v258 = vadd.f32 %v174, %v257
    %v259 = vpop.f32.mrb[0].mxu0
    %260 = vmatprep.mubr.f32.mxu0 0.0
    %261 = vmatmul.mubr.f32.gmra.mrb[0].mxu0 %v125
    %v262 = vpop.f32.mrb[0].mxu0
    %v263 = vadd.f32 %v174, %v262
    %v264 = vpop.f32.mrb[0].mxu0
    %265 = vmatprep.mubr.f32.mxu0 0.0
    %266 = vmatmul.mubr.f32.gmra.mrb[0].mxu0 %v126
    %v267 = vpop.f32.mrb[0].mxu0
    %v268 = vadd.f32 %v174, %v267
    %v269 = vpop.f32.mrb[0].mxu0
    %270 = vmatprep.mubr.f32.mxu0 0.0
    %271 = vmatmul.mubr.f32.gmra.mrb[0].mxu0 %v127
    %v272 = vpop.f32.mrb[0].mxu0
    %v273 = vadd.f32 %v174, %v272
    %v274 = vpop.f32.mrb[0].mxu0
    %275 = vmatprep.mubr.f32.mxu0 0.0
    %276 = vmatmul.mubr.f32.gmra.mrb[0].mxu0 %v128
    %v277 = vpop.f32.mrb[0].mxu0
    %v278 = vadd.f32 %v174, %v277
    %v279 = vpop.f32.mrb[0].mxu0
    %280 = vmatprep.mubr.f32.mxu0 0.0
    %281 = vmatmul.mubr.f32.gmra.mrb[0].mxu0 %v129
    %v282 = vpop.f32.mrb[0].mxu0
    %v283 = vadd.f32 %v174, %v282
    %v284 = vpop.f32.mrb[0].mxu0
    %285 = vmatprep.mubr.f32.mxu0 0.0
    %286 = vmatmul.mubr.f32.gmra.mrb[0].mxu0 %v130
    %v287 = vpop.f32.mrb[0].mxu0
    %v288 = vadd.f32 %v174, %v287
    %v289 = vpop.f32.mrb[0].mxu0
    %290 = vmatprep.mubr.f32.mxu0 0.0
    %291 = vmatmul.mubr.f32.gmra.mrb[0].mxu0 %v131
    %v292 = vpop.f32.mrb[0].mxu0
    %v293 = vadd.f32 %v174, %v292
    %v294 = vpop.f32.mrb[0].mxu0
    %295 = vmatprep.mubr.f32.mxu0 0.0
    %296 = vmatmul.mubr.f32.gmra.mrb[0].mxu0 %v132
    %v297 = vpop.f32.mrb[0].mxu0
    %v298 = vadd.f32 %v174, %v297
    %v299 = vpop.f32.mrb[0].mxu0
    %300 = vmatprep.mubr.f32.mxu0 0.0
    %301 = vmatmul.mubr.f32.gmra.mrb[0].mxu0 %v133
    %v302 = vpop.f32.mrb[0].mxu0
    %v303 = vadd.f32 %v174, %v302
    %v304 = vpop.f32.mrb[0].mxu0
    %305 = vmatprep.mubr.f32.mxu0 0.0
    %306 = vmatmul.mubr.f32.gmra.mrb[0].mxu0 %v134
    %v307 = vpop.f32.mrb[0].mxu0
    %v308 = vadd.f32 %v174, %v307
    %v309 = vpop.f32.mrb[0].mxu0
    %310 = vmatprep.mubr.f32.mxu0 0.0
    %311 = vmatmul.mubr.f32.gmra.mrb[0].mxu0 %v135
    %v312 = vpop.f32.mrb[0].mxu0
    %v313 = vadd.f32 %v174, %v312
    %v314 = vpop.f32.mrb[0].mxu0
    %315 = vmatprep.mubr.f32.mxu0 0.0
    %316 = vmatmul.mubr.f32.gmra.mrb[0].mxu0 %v136
    %v317 = vpop.f32.mrb[0].mxu0
    %v318 = vadd.f32 %v174, %v317
    %v319 = vpop.f32.mrb[0].mxu0
    %320 = vmatprep.mubr.f32.mxu0 0.0
    %321 = vmatmul.mubr.f32.gmra.mrb[0].mxu0 %v137
    %v322 = vpop.f32.mrb[0].mxu0
    %v323 = vadd.f32 %v174, %v322
    %v324 = vpop.f32.mrb[0].mxu0
    %325 = vmatprep.mubr.f32.mxu0 0.0
    %326 = vmatmul.mubr.f32.gmra.mrb[0].mxu0 %v138
    %v327 = vpop.f32.mrb[0].mxu0
    %v328 = vadd.f32 %v174, %v327
    %v329 = vpop.f32.mrb[0].mxu0
    %330 = vmatprep.mubr.f32.mxu0 0.0
    %331 = vmatmul.mubr.f32.gmra.mrb[0].mxu0 %v139
    %v332 = vpop.f32.mrb[0].mxu0
    %v333 = vadd.f32 %v174, %v332
    %v334 = vpop.f32.mrb[0].mxu0
    %335 = vmatprep.mubr.f32.mxu0 0.0
    %336 = vmatmul.mubr.f32.gmra.mrb[0].mxu0 %v140
    %v337 = vpop.f32.mrb[0].mxu0
    %v338 = vadd.f32 %v174, %v337
    %v339 = vpop.f32.mrb[0].mxu0
    %340 = vmatprep.mubr.f32.mxu0 0.0
    %341 = vmatmul.mubr.f32.gmra.mrb[0].mxu0 %v141
    %v342 = vpop.f32.mrb[0].mxu0
    %v343 = vadd.f32 %v174, %v342
    %v344 = vpop.f32.mrb[0].mxu0
    %345 = vmatprep.mubr.f32.mxu0 0.0
    %346 = vmatmul.mubr.f32.gmra.mrb[0].mxu0 %v142
    %v347 = vpop.f32.mrb[0].mxu0
    %v348 = vadd.f32 %v174, %v347
    %v349 = vpop.f32.mrb[0].mxu0
    %350 = vmatprep.mubr.f32.mxu0 0.0
    %351 = vmatmul.mubr.f32.gmra.mrb[0].mxu0 %v143
    %v352 = vpop.f32.mrb[0].mxu0
    %v353 = vadd.f32 %v174, %v352
    %v354 = vpop.f32.mrb[0].mxu0
    %355 = vmatprep.mubr.f32.mxu0 0.0
    %356 = vmatmul.mubr.f32.gmra.mrb[0].mxu0 %v144
    %v357 = vpop.f32.mrb[0].mxu0
    %v358 = vadd.f32 %v174, %v357
    %v359 = vpop.f32.mrb[0].mxu0
    %360 = vmatprep.mubr.f32.mxu0 0.0
    %361 = vmatmul.mubr.f32.gmra.mrb[0].mxu0 %v145
    %v362 = vpop.f32.mrb[0].mxu0
    %v363 = vadd.f32 %v174, %v362
    %v364 = vpop.f32.mrb[0].mxu0
    %365 = vmatprep.mubr.f32.mxu0 0.0
    %366 = vmatmul.mubr.f32.gmra.mrb[0].mxu0 %v146
    %v367 = vpop.f32.mrb[0].mxu0
    %v368 = vadd.f32 %v174, %v367
    %v369 = vpop.f32.mrb[0].mxu0
    %370 = vmatprep.mubr.f32.mxu0 0.0
    %371 = vmatmul.mubr.f32.gmra.mrb[0].mxu0 %v147
    %v372 = vpop.f32.mrb[0].mxu0
    %v373 = vadd.f32 %v174, %v372
    %v374 = vpop.f32.mrb[0].mxu0
    %375 = vmatprep.mubr.f32.mxu0 0.0
    %376 = vmatmul.mubr.f32.gmra.mrb[0].mxu0 %v148
    %v377 = vpop.f32.mrb[0].mxu0
    %v378 = vadd.f32 %v174, %v377
    %v379 = vpop.f32.mrb[0].mxu0
    %380 = vmatprep.mubr.f32.mxu0 0.0
    %381 = vmatmul.mubr.f32.gmra.mrb[0].mxu0 %v149
    %v382 = vpop.f32.mrb[0].mxu0
    %v383 = vadd.f32 %v174, %v382
    %v384 = vpop.f32.mrb[0].mxu0
    %385 = vmatprep.mubr.f32.mxu0 0.0
    %386 = vmatmul.mubr.f32.gmra.mrb[0].mxu0 %v150
    %v387 = vpop.f32.mrb[0].mxu0
    %v388 = vadd.f32 %v174, %v387
    %v389 = vpop.f32.mrb[0].mxu0
    %390 = vmatprep.mubr.f32.mxu0 0.0
    %391 = vmatmul.mubr.f32.gmra.mrb[0].mxu0 %v151
    %v392 = vpop.f32.mrb[0].mxu0
    %v393 = vadd.f32 %v174, %v392
    %v394 = vpop.f32.mrb[0].mxu0
    %395 = vmatprep.mubr.f32.mxu0 0.0
    %396 = vmatmul.mubr.f32.gmra.mrb[0].mxu0 %v152
    %v397 = vpop.f32.mrb[0].mxu0
    %v398 = vadd.f32 %v174, %v397
    %v399 = vpop.f32.mrb[0].mxu0
    %400 = vdwg.mxu0
    %v401 = vmul.f32 %v243, 0.5
    %v402 = vmul.f32 %v248, 0.5
    %v403 = vmul.f32 %v253, 0.5
    %v404 = vmul.f32 %v258, 0.5
    %v405 = vmul.f32 %v263, 0.5
    %v406 = vmul.f32 %v268, 0.5
    %v407 = vmul.f32 %v273, 0.5
    %v408 = vmul.f32 %v278, 0.5
    %v409 = vmul.f32 %v283, 0.5
    %v410 = vmul.f32 %v288, 0.5
    %v411 = vmul.f32 %v293, 0.5
    %v412 = vmul.f32 %v298, 0.5
    %v413 = vmul.f32 %v303, 0.5
    %v414 = vmul.f32 %v308, 0.5
    %v415 = vmul.f32 %v313, 0.5
    %v416 = vmul.f32 %v318, 0.5
    %v417 = vmul.f32 %v323, 0.5
    %v418 = vmul.f32 %v328, 0.5
    %v419 = vmul.f32 %v333, 0.5
    %v420 = vmul.f32 %v338, 0.5
    %v421 = vmul.f32 %v343, 0.5
    %v422 = vmul.f32 %v348, 0.5
    %v423 = vmul.f32 %v353, 0.5
    %v424 = vmul.f32 %v358, 0.5
    %v425 = vmul.f32 %v363, 0.5
    %v426 = vmul.f32 %v368, 0.5
    %v427 = vmul.f32 %v373, 0.5
    %v428 = vmul.f32 %v378, 0.5
    %v429 = vmul.f32 %v383, 0.5
    %v430 = vmul.f32 %v388, 0.5
    %v431 = vmul.f32 %v393, 0.5
    %v432 = vmul.f32 %v398, 0.5
    %v433 = vmul.f32 %v243, 0.70710677
    %v434 = vmul.f32 %v248, 0.70710677
    %v435 = vmul.f32 %v253, 0.70710677
    %v436 = vmul.f32 %v258, 0.70710677
    %v437 = vmul.f32 %v263, 0.70710677
    %v438 = vmul.f32 %v268, 0.70710677
    %v439 = vmul.f32 %v273, 0.70710677
    %v440 = vmul.f32 %v278, 0.70710677
    %v441 = vmul.f32 %v283, 0.70710677
    %v442 = vmul.f32 %v288, 0.70710677
    %v443 = vmul.f32 %v293, 0.70710677
    %v444 = vmul.f32 %v298, 0.70710677
    %v445 = vmul.f32 %v303, 0.70710677
    %v446 = vmul.f32 %v308, 0.70710677
    %v447 = vmul.f32 %v313, 0.70710677
    %v448 = vmul.f32 %v318, 0.70710677
    %v449 = vmul.f32 %v323, 0.70710677
    %v450 = vmul.f32 %v328, 0.70710677
    %v451 = vmul.f32 %v333, 0.70710677
    %v452 = vmul.f32 %v338, 0.70710677
    %v453 = vmul.f32 %v343, 0.70710677
    %v454 = vmul.f32 %v348, 0.70710677
    %v455 = vmul.f32 %v353, 0.70710677
    %v456 = vmul.f32 %v358, 0.70710677
    %v457 = vmul.f32 %v363, 0.70710677
    %v458 = vmul.f32 %v368, 0.70710677
    %v459 = vmul.f32 %v373, 0.70710677
    %v460 = vmul.f32 %v378, 0.70710677
    %v461 = vmul.f32 %v383, 0.70710677
    %v462 = vmul.f32 %v388, 0.70710677
    %v463 = vmul.f32 %v393, 0.70710677
    %v464 = vmul.f32 %v398, 0.70710677
    %v465 = verf.f32.pop %v433
    %v466 = verf.f32.pop %v434
    %v467 = verf.f32.pop %v435
    %v468 = verf.f32.pop %v436
    %v469 = verf.f32.pop %v437
    %v470 = verf.f32.pop %v438
    %v471 = verf.f32.pop %v439
    %v472 = verf.f32.pop %v440
    %v473 = verf.f32.pop %v441
    %v474 = verf.f32.pop %v442
    %v475 = verf.f32.pop %v443
    %v476 = verf.f32.pop %v444
    %v477 = verf.f32.pop %v445
    %v478 = verf.f32.pop %v446
    %v479 = verf.f32.pop %v447
    %v480 = verf.f32.pop %v448
    %v481 = verf.f32.pop %v449
    %v482 = verf.f32.pop %v450
    %v483 = verf.f32.pop %v451
    %v484 = verf.f32.pop %v452
    %v485 = verf.f32.pop %v453
    %v486 = verf.f32.pop %v454
    %v487 = verf.f32.pop %v455
    %v488 = verf.f32.pop %v456
    %v489 = verf.f32.pop %v457
    %v490 = verf.f32.pop %v458
    %v491 = verf.f32.pop %v459
    %v492 = verf.f32.pop %v460
    %v493 = verf.f32.pop %v461
    %v494 = verf.f32.pop %v462
    %v495 = verf.f32.pop %v463
    %v496 = verf.f32.pop %v464
    %v497 = vadd.f32 %v465, 1.0
    %v498 = vadd.f32 %v466, 1.0
    %v499 = vadd.f32 %v467, 1.0
    %v500 = vadd.f32 %v468, 1.0
    %v501 = vadd.f32 %v469, 1.0
    %v502 = vadd.f32 %v470, 1.0
    %v503 = vadd.f32 %v471, 1.0
    %v504 = vadd.f32 %v472, 1.0
    %v505 = vadd.f32 %v473, 1.0
    %v506 = vadd.f32 %v474, 1.0
    %v507 = vadd.f32 %v475, 1.0
    %v508 = vadd.f32 %v476, 1.0
    %v509 = vadd.f32 %v477, 1.0
    %v510 = vadd.f32 %v478, 1.0
    %v511 = vadd.f32 %v479, 1.0
    %v512 = vadd.f32 %v480, 1.0
    %v513 = vadd.f32 %v481, 1.0
    %v514 = vadd.f32 %v482, 1.0
    %v515 = vadd.f32 %v483, 1.0
    %v516 = vadd.f32 %v484, 1.0
    %v517 = vadd.f32 %v485, 1.0
    %v518 = vadd.f32 %v486, 1.0
    %v519 = vadd.f32 %v487, 1.0
    %v520 = vadd.f32 %v488, 1.0
    %v521 = vadd.f32 %v489, 1.0
    %v522 = vadd.f32 %v490, 1.0
    %v523 = vadd.f32 %v491, 1.0
    %v524 = vadd.f32 %v492, 1.0
    %v525 = vadd.f32 %v493, 1.0
    %v526 = vadd.f32 %v494, 1.0
    %v527 = vadd.f32 %v495, 1.0
    %v528 = vadd.f32 %v496, 1.0
    %v529 = vmul.f32 %v401, %v497
    %v530 = vmul.f32 %v402, %v498
    %v531 = vmul.f32 %v403, %v499
    %v532 = vmul.f32 %v404, %v500
    %v533 = vmul.f32 %v405, %v501
    %v534 = vmul.f32 %v406, %v502
    %v535 = vmul.f32 %v407, %v503
    %v536 = vmul.f32 %v408, %v504
    %v537 = vmul.f32 %v409, %v505
    %v538 = vmul.f32 %v410, %v506
    %v539 = vmul.f32 %v411, %v507
    %v540 = vmul.f32 %v412, %v508
    %v541 = vmul.f32 %v413, %v509
    %v542 = vmul.f32 %v414, %v510
    %v543 = vmul.f32 %v415, %v511
    %v544 = vmul.f32 %v416, %v512
    %v545 = vmul.f32 %v417, %v513
    %v546 = vmul.f32 %v418, %v514
    %v547 = vmul.f32 %v419, %v515
    %v548 = vmul.f32 %v420, %v516
    %v549 = vmul.f32 %v421, %v517
    %v550 = vmul.f32 %v422, %v518
    %v551 = vmul.f32 %v423, %v519
    %v552 = vmul.f32 %v424, %v520
    %v553 = vmul.f32 %v425, %v521
    %v554 = vmul.f32 %v426, %v522
    %v555 = vmul.f32 %v427, %v523
    %v556 = vmul.f32 %v428, %v524
    %v557 = vmul.f32 %v429, %v525
    %v558 = vmul.f32 %v430, %v526
    %v559 = vmul.f32 %v431, %v527
    %v560 = vmul.f32 %v432, %v528
    %v561 = vld [vmem:[#allocation2] sm:$0xff]
    %v562 = vld [vmem:[#allocation2 + $0x8] sm:$0xff]
    %v563 = vld [vmem:[#allocation2 + $0x10] sm:$0xff]
    %v564 = vld [vmem:[#allocation2 + $0x18] sm:$0xff]
    %v565 = vld [vmem:[#allocation2 + $0x20] sm:$0xff]
    %v566 = vld [vmem:[#allocation2 + $0x28] sm:$0xff]
    %v567 = vld [vmem:[#allocation2 + $0x30] sm:$0xff]
    %v568 = vld [vmem:[#allocation2 + $0x38] sm:$0xff]
    %v569 = vld [vmem:[#allocation2 + $0x40] sm:$0xff]
    %v570 = vld [vmem:[#allocation2 + $0x48] sm:$0xff]
    %v571 = vld [vmem:[#allocation2 + $0x50] sm:$0xff]
    %v572 = vld [vmem:[#allocation2 + $0x58] sm:$0xff]
    %v573 = vld [vmem:[#allocation2 + $0x60] sm:$0xff]
    %v574 = vld [vmem:[#allocation2 + $0x68] sm:$0xff]
    %v575 = vld [vmem:[#allocation2 + $0x70] sm:$0xff]
    %v576 = vld [vmem:[#allocation2 + $0x78] sm:$0xff]
    %v577 = vld [vmem:[#allocation2 + $0x80] sm:$0xff]
    %v578 = vld [vmem:[#allocation2 + $0x88] sm:$0xff]
    %v579 = vld [vmem:[#allocation2 + $0x90] sm:$0xff]
    %v580 = vld [vmem:[#allocation2 + $0x98] sm:$0xff]
    %v581 = vld [vmem:[#allocation2 + $0xa0] sm:$0xff]
    %v582 = vld [vmem:[#allocation2 + $0xa8] sm:$0xff]
    %v583 = vld [vmem:[#allocation2 + $0xb0] sm:$0xff]
    %v584 = vld [vmem:[#allocation2 + $0xb8] sm:$0xff]
    %v585 = vld [vmem:[#allocation2 + $0xc0] sm:$0xff]
    %v586 = vld [vmem:[#allocation2 + $0xc8] sm:$0xff]
    %v587 = vld [vmem:[#allocation2 + $0xd0] sm:$0xff]
    %v588 = vld [vmem:[#allocation2 + $0xd8] sm:$0xff]
    %v589 = vld [vmem:[#allocation2 + $0xe0] sm:$0xff]
    %v590 = vld [vmem:[#allocation2 + $0xe8] sm:$0xff]
    %v591 = vld [vmem:[#allocation2 + $0xf0] sm:$0xff]
    %v592 = vld [vmem:[#allocation2 + $0xf8] sm:$0xff]
    %v593 = vld [vmem:[#allocation9] sm:$0xff]
    %v594 = vld [vmem:[#allocation9 + $0x8] sm:$0xff]
    %v595 = vld [vmem:[#allocation9 + $0x10] sm:$0xff]
    %v596 = vld [vmem:[#allocation9 + $0x18] sm:$0xff]
    %v597 = vld [vmem:[#allocation9 + $0x20] sm:$0xff]
    %v598 = vld [vmem:[#allocation9 + $0x28] sm:$0xff]
    %v599 = vld [vmem:[#allocation9 + $0x30] sm:$0xff]
    %v600 = vld [vmem:[#allocation9 + $0x38] sm:$0xff]
    %v601 = vld [vmem:[#allocation9 + $0x40] sm:$0xff]
    %v602 = vld [vmem:[#allocation9 + $0x48] sm:$0xff]
    %v603 = vld [vmem:[#allocation9 + $0x50] sm:$0xff]
    %v604 = vld [vmem:[#allocation9 + $0x58] sm:$0xff]
    %v605 = vld [vmem:[#allocation9 + $0x60] sm:$0xff]
    %v606 = vld [vmem:[#allocation9 + $0x68] sm:$0xff]
    %v607 = vld [vmem:[#allocation9 + $0x70] sm:$0xff]
    %v608 = vld [vmem:[#allocation9 + $0x78] sm:$0xff]
    %609 = vmatprep.subr.mxu0 0.0
    %610 = vmatpush1.msra.mxu0 %v593
    %611 = vmatprep.subr.mxu0 0.0
    %612 = vmatpush1.msra.mxu0 %v594
    %613 = vmatprep.subr.mxu0 0.0
    %614 = vmatpush1.msra.mxu0 %v595
    %615 = vmatprep.subr.mxu0 0.0
    %616 = vmatpush1.msra.mxu0 %v596
    %617 = vmatprep.subr.mxu0 0.0
    %618 = vmatpush1.msra.mxu0 %v597
    %619 = vmatprep.subr.mxu0 0.0
    %620 = vmatpush1.msra.mxu0 %v598
    %621 = vmatprep.subr.mxu0 0.0
    %622 = vmatpush1.msra.mxu0 %v599
    %623 = vmatprep.subr.mxu0 0.0
    %624 = vmatpush1.msra.mxu0 %v600
    %625 = vmatprep.subr.mxu0 0.0
    %626 = vmatpush1.msra.mxu0 %v601
    %627 = vmatprep.subr.mxu0 0.0
    %628 = vmatpush1.msra.mxu0 %v602
    %629 = vmatprep.subr.mxu0 0.0
    %630 = vmatpush1.msra.mxu0 %v603
    %631 = vmatprep.subr.mxu0 0.0
    %632 = vmatpush1.msra.mxu0 %v604
    %633 = vmatprep.subr.mxu0 0.0
    %634 = vmatpush1.msra.mxu0 %v605
    %635 = vmatprep.subr.mxu0 0.0
    %636 = vmatpush1.msra.mxu0 %v606
    %637 = vmatprep.subr.mxu0 0.0
    %638 = vmatpush1.msra.mxu0 %v607
    %639 = vmatprep.subr.mxu0 0.0
    %640 = vmatpush1.msra.mxu0 %v608
    %641 = vmatprep.subr.mxu0 0.0
    %642 = vmatpush1.msra.mxu0 0.0
    %643 = vmatprep.subr.mxu0 0.0
    %644 = vmatpush1.msra.mxu0 0.0
    %645 = vmatprep.subr.mxu0 0.0
    %646 = vmatpush1.msra.mxu0 0.0
    %647 = vmatprep.subr.mxu0 0.0
    %648 = vmatpush1.msra.mxu0 0.0
    %649 = vmatprep.subr.mxu0 0.0
    %650 = vmatpush1.msra.mxu0 0.0
    %651 = vmatprep.subr.mxu0 0.0
    %652 = vmatpush1.msra.mxu0 0.0
    %653 = vmatprep.subr.mxu0 0.0
    %654 = vmatpush1.msra.mxu0 0.0
    %655 = vmatprep.subr.mxu0 0.0
    %656 = vmatpush1.msra.mxu0 0.0
    %657 = vmatprep.subr.mxu0 0.0
    %658 = vmatpush1.msra.mxu0 0.0
    %659 = vmatprep.subr.mxu0 0.0
    %660 = vmatpush1.msra.mxu0 0.0
    %661 = vmatprep.subr.mxu0 0.0
    %662 = vmatpush1.msra.mxu0 0.0
    %663 = vmatprep.subr.mxu0 0.0
    %664 = vmatpush1.msra.mxu0 0.0
    %665 = vmatprep.subr.mxu0 0.0
    %666 = vmatpush1.msra.mxu0 0.0
    %667 = vmatprep.subr.mxu0 0.0
    %668 = vmatpush1.msra.mxu0 0.0
    %669 = vmatprep.subr.mxu0 0.0
    %670 = vmatpush1.msra.mxu0 0.0
    %671 = vmatprep.subr.mxu0 0.0
    %672 = vmatpush1.msra.mxu0 0.0
    %673 = vmatprep.mubr.f32.mxu0 0.0
    %674 = vmatmul.mubr.f32.gmra.mrb[0].mxu0 %v529
    %v675 = vpop.f32.mrb[0].mxu0
    %v676 = vadd.f32 0.0, %v675
    %v677 = vpop.f32.mrb[0].mxu0
    %678 = vmatprep.mubr.f32.mxu0 0.0
    %679 = vmatmul.mubr.f32.gmra.mrb[0].mxu0 %v530
    %v680 = vpop.f32.mrb[0].mxu0
    %v681 = vadd.f32 0.0, %v680
    %v682 = vpop.f32.mrb[0].mxu0
    %683 = vmatprep.mubr.f32.mxu0 0.0
    %684 = vmatmul.mubr.f32.gmra.mrb[0].mxu0 %v531
    %v685 = vpop.f32.mrb[0].mxu0
    %v686 = vadd.f32 0.0, %v685
    %v687 = vpop.f32.mrb[0].mxu0
    %688 = vmatprep.mubr.f32.mxu0 0.0
    %689 = vmatmul.mubr.f32.gmra.mrb[0].mxu0 %v532
    %v690 = vpop.f32.mrb[0].mxu0
    %v691 = vadd.f32 0.0, %v690
    %v692 = vpop.f32.mrb[0].mxu0
    %693 = vmatprep.mubr.f32.mxu0 0.0
    %694 = vmatmul.mubr.f32.gmra.mrb[0].mxu0 %v533
    %v695 = vpop.f32.mrb[0].mxu0
    %v696 = vadd.f32 0.0, %v695
    %v697 = vpop.f32.mrb[0].mxu0
    %698 = vmatprep.mubr.f32.mxu0 0.0
    %699 = vmatmul.mubr.f32.gmra.mrb[0].mxu0 %v534
    %v700 = vpop.f32.mrb[0].mxu0
    %v701 = vadd.f32 0.0, %v700
    %v702 = vpop.f32.mrb[0].mxu0
    %703 = vmatprep.mubr.f32.mxu0 0.0
    %704 = vmatmul.mubr.f32.gmra.mrb[0].mxu0 %v535
    %v705 = vpop.f32.mrb[0].mxu0
    %v706 = vadd.f32 0.0, %v705
    %v707 = vpop.f32.mrb[0].mxu0
    %708 = vmatprep.mubr.f32.mxu0 0.0
    %709 = vmatmul.mubr.f32.gmra.mrb[0].mxu0 %v536
    %v710 = vpop.f32.mrb[0].mxu0
    %v711 = vadd.f32 0.0, %v710
    %v712 = vpop.f32.mrb[0].mxu0
    %713 = vmatprep.mubr.f32.mxu0 0.0
    %714 = vmatmul.mubr.f32.gmra.mrb[0].mxu0 %v537
    %v715 = vpop.f32.mrb[0].mxu0
    %v716 = vadd.f32 0.0, %v715
    %v717 = vpop.f32.mrb[0].mxu0
    %718 = vmatprep.mubr.f32.mxu0 0.0
    %719 = vmatmul.mubr.f32.gmra.mrb[0].mxu0 %v538
    %v720 = vpop.f32.mrb[0].mxu0
    %v721 = vadd.f32 0.0, %v720
    %v722 = vpop.f32.mrb[0].mxu0
    %723 = vmatprep.mubr.f32.mxu0 0.0
    %724 = vmatmul.mubr.f32.gmra.mrb[0].mxu0 %v539
    %v725 = vpop.f32.mrb[0].mxu0
    %v726 = vadd.f32 0.0, %v725
    %v727 = vpop.f32.mrb[0].mxu0
    %728 = vmatprep.mubr.f32.mxu0 0.0
    %729 = vmatmul.mubr.f32.gmra.mrb[0].mxu0 %v540
    %v730 = vpop.f32.mrb[0].mxu0
    %v731 = vadd.f32 0.0, %v730
    %v732 = vpop.f32.mrb[0].mxu0
    %733 = vmatprep.mubr.f32.mxu0 0.0
    %734 = vmatmul.mubr.f32.gmra.mrb[0].mxu0 %v541
    %v735 = vpop.f32.mrb[0].mxu0
    %v736 = vadd.f32 0.0, %v735
    %v737 = vpop.f32.mrb[0].mxu0
    %738 = vmatprep.mubr.f32.mxu0 0.0
    %739 = vmatmul.mubr.f32.gmra.mrb[0].mxu0 %v542
    %v740 = vpop.f32.mrb[0].mxu0
    %v741 = vadd.f32 0.0, %v740
    %v742 = vpop.f32.mrb[0].mxu0
    %743 = vmatprep.mubr.f32.mxu0 0.0
    %744 = vmatmul.mubr.f32.gmra.mrb[0].mxu0 %v543
    %v745 = vpop.f32.mrb[0].mxu0
    %v746 = vadd.f32 0.0, %v745
    %v747 = vpop.f32.mrb[0].mxu0
    %748 = vmatprep.mubr.f32.mxu0 0.0
    %749 = vmatmul.mubr.f32.gmra.mrb[0].mxu0 %v544
    %v750 = vpop.f32.mrb[0].mxu0
    %v751 = vadd.f32 0.0, %v750
    %v752 = vpop.f32.mrb[0].mxu0
    %753 = vmatprep.mubr.f32.mxu0 0.0
    %754 = vmatmul.mubr.f32.gmra.mrb[0].mxu0 %v545
    %v755 = vpop.f32.mrb[0].mxu0
    %v756 = vadd.f32 0.0, %v755
    %v757 = vpop.f32.mrb[0].mxu0
    %758 = vmatprep.mubr.f32.mxu0 0.0
    %759 = vmatmul.mubr.f32.gmra.mrb[0].mxu0 %v546
    %v760 = vpop.f32.mrb[0].mxu0
    %v761 = vadd.f32 0.0, %v760
    %v762 = vpop.f32.mrb[0].mxu0
    %763 = vmatprep.mubr.f32.mxu0 0.0
    %764 = vmatmul.mubr.f32.gmra.mrb[0].mxu0 %v547
    %v765 = vpop.f32.mrb[0].mxu0
    %v766 = vadd.f32 0.0, %v765
    %v767 = vpop.f32.mrb[0].mxu0
    %768 = vmatprep.mubr.f32.mxu0 0.0
    %769 = vmatmul.mubr.f32.gmra.mrb[0].mxu0 %v548
    %v770 = vpop.f32.mrb[0].mxu0
    %v771 = vadd.f32 0.0, %v770
    %v772 = vpop.f32.mrb[0].mxu0
    %773 = vmatprep.mubr.f32.mxu0 0.0
    %774 = vmatmul.mubr.f32.gmra.mrb[0].mxu0 %v549
    %v775 = vpop.f32.mrb[0].mxu0
    %v776 = vadd.f32 0.0, %v775
    %v777 = vpop.f32.mrb[0].mxu0
    %778 = vmatprep.mubr.f32.mxu0 0.0
    %779 = vmatmul.mubr.f32.gmra.mrb[0].mxu0 %v550
    %v780 = vpop.f32.mrb[0].mxu0
    %v781 = vadd.f32 0.0, %v780
    %v782 = vpop.f32.mrb[0].mxu0
    %783 = vmatprep.mubr.f32.mxu0 0.0
    %784 = vmatmul.mubr.f32.gmra.mrb[0].mxu0 %v551
    %v785 = vpop.f32.mrb[0].mxu0
    %v786 = vadd.f32 0.0, %v785
    %v787 = vpop.f32.mrb[0].mxu0
    %788 = vmatprep.mubr.f32.mxu0 0.0
    %789 = vmatmul.mubr.f32.gmra.mrb[0].mxu0 %v552
    %v790 = vpop.f32.mrb[0].mxu0
    %v791 = vadd.f32 0.0, %v790
    %v792 = vpop.f32.mrb[0].mxu0
    %793 = vmatprep.mubr.f32.mxu0 0.0
    %794 = vmatmul.mubr.f32.gmra.mrb[0].mxu0 %v553
    %v795 = vpop.f32.mrb[0].mxu0
    %v796 = vadd.f32 0.0, %v795
    %v797 = vpop.f32.mrb[0].mxu0
    %798 = vmatprep.mubr.f32.mxu0 0.0
    %799 = vmatmul.mubr.f32.gmra.mrb[0].mxu0 %v554
    %v800 = vpop.f32.mrb[0].mxu0
    %v801 = vadd.f32 0.0, %v800
    %v802 = vpop.f32.mrb[0].mxu0
    %803 = vmatprep.mubr.f32.mxu0 0.0
    %804 = vmatmul.mubr.f32.gmra.mrb[0].mxu0 %v555
    %v805 = vpop.f32.mrb[0].mxu0
    %v806 = vadd.f32 0.0, %v805
    %v807 = vpop.f32.mrb[0].mxu0
    %808 = vmatprep.mubr.f32.mxu0 0.0
    %809 = vmatmul.mubr.f32.gmra.mrb[0].mxu0 %v556
    %v810 = vpop.f32.mrb[0].mxu0
    %v811 = vadd.f32 0.0, %v810
    %v812 = vpop.f32.mrb[0].mxu0
    %813 = vmatprep.mubr.f32.mxu0 0.0
    %814 = vmatmul.mubr.f32.gmra.mrb[0].mxu0 %v557
    %v815 = vpop.f32.mrb[0].mxu0
    %v816 = vadd.f32 0.0, %v815
    %v817 = vpop.f32.mrb[0].mxu0
    %818 = vmatprep.mubr.f32.mxu0 0.0
    %819 = vmatmul.mubr.f32.gmra.mrb[0].mxu0 %v558
    %v820 = vpop.f32.mrb[0].mxu0
    %v821 = vadd.f32 0.0, %v820
    %v822 = vpop.f32.mrb[0].mxu0
    %823 = vmatprep.mubr.f32.mxu0 0.0
    %824 = vmatmul.mubr.f32.gmra.mrb[0].mxu0 %v559
    %v825 = vpop.f32.mrb[0].mxu0
    %v826 = vadd.f32 0.0, %v825
    %v827 = vpop.f32.mrb[0].mxu0
    %828 = vmatprep.mubr.f32.mxu0 0.0
    %829 = vmatmul.mubr.f32.gmra.mrb[0].mxu0 %v560
    %v830 = vpop.f32.mrb[0].mxu0
    %v831 = vadd.f32 0.0, %v830
    %v832 = vpop.f32.mrb[0].mxu0
    %833 = vdwg.mxu0
    %v834 = vadd.f32 %v561, %v676
    %v835 = vadd.f32 %v562, %v681
    %v836 = vadd.f32 %v563, %v686
    %v837 = vadd.f32 %v564, %v691
    %v838 = vadd.f32 %v565, %v696
    %v839 = vadd.f32 %v566, %v701
    %v840 = vadd.f32 %v567, %v706
    %v841 = vadd.f32 %v568, %v711
    %v842 = vadd.f32 %v569, %v716
    %v843 = vadd.f32 %v570, %v721
    %v844 = vadd.f32 %v571, %v726
    %v845 = vadd.f32 %v572, %v731
    %v846 = vadd.f32 %v573, %v736
    %v847 = vadd.f32 %v574, %v741
    %v848 = vadd.f32 %v575, %v746
    %v849 = vadd.f32 %v576, %v751
    %v850 = vadd.f32 %v577, %v756
    %v851 = vadd.f32 %v578, %v761
    %v852 = vadd.f32 %v579, %v766
    %v853 = vadd.f32 %v580, %v771
    %v854 = vadd.f32 %v581, %v776
    %v855 = vadd.f32 %v582, %v781
    %v856 = vadd.f32 %v583, %v786
    %v857 = vadd.f32 %v584, %v791
    %v858 = vadd.f32 %v585, %v796
    %v859 = vadd.f32 %v586, %v801
    %v860 = vadd.f32 %v587, %v806
    %v861 = vadd.f32 %v588, %v811
    %v862 = vadd.f32 %v589, %v816
    %v863 = vadd.f32 %v590, %v821
    %v864 = vadd.f32 %v591, %v826
    %v865 = vadd.f32 %v592, %v831
    %866 = vst [vmem:[#allocation2] sm:$0xff] %v834
    %867 = vst [vmem:[#allocation2 + $0x8] sm:$0xff] %v835
    %868 = vst [vmem:[#allocation2 + $0x10] sm:$0xff] %v836
    %869 = vst [vmem:[#allocation2 + $0x18] sm:$0xff] %v837
    %870 = vst [vmem:[#allocation2 + $0x20] sm:$0xff] %v838
    %871 = vst [vmem:[#allocation2 + $0x28] sm:$0xff] %v839
    %872 = vst [vmem:[#allocation2 + $0x30] sm:$0xff] %v840
    %873 = vst [vmem:[#allocation2 + $0x38] sm:$0xff] %v841
    %874 = vst [vmem:[#allocation2 + $0x40] sm:$0xff] %v842
    %875 = vst [vmem:[#allocation2 + $0x48] sm:$0xff] %v843
    %876 = vst [vmem:[#allocation2 + $0x50] sm:$0xff] %v844
    %877 = vst [vmem:[#allocation2 + $0x58] sm:$0xff] %v845
    %878 = vst [vmem:[#allocation2 + $0x60] sm:$0xff] %v846
    %879 = vst [vmem:[#allocation2 + $0x68] sm:$0xff] %v847
    %880 = vst [vmem:[#allocation2 + $0x70] sm:$0xff] %v848
    %881 = vst [vmem:[#allocation2 + $0x78] sm:$0xff] %v849
    %882 = vst [vmem:[#allocation2 + $0x80] sm:$0xff] %v850
    %883 = vst [vmem:[#allocation2 + $0x88] sm:$0xff] %v851
    %884 = vst [vmem:[#allocation2 + $0x90] sm:$0xff] %v852
    %885 = vst [vmem:[#allocation2 + $0x98] sm:$0xff] %v853
    %886 = vst [vmem:[#allocation2 + $0xa0] sm:$0xff] %v854
    %887 = vst [vmem:[#allocation2 + $0xa8] sm:$0xff] %v855
    %888 = vst [vmem:[#allocation2 + $0xb0] sm:$0xff] %v856
    %889 = vst [vmem:[#allocation2 + $0xb8] sm:$0xff] %v857
    %890 = vst [vmem:[#allocation2 + $0xc0] sm:$0xff] %v858
    %891 = vst [vmem:[#allocation2 + $0xc8] sm:$0xff] %v859
    %892 = vst [vmem:[#allocation2 + $0xd0] sm:$0xff] %v860
    %893 = vst [vmem:[#allocation2 + $0xd8] sm:$0xff] %v861
    %894 = vst [vmem:[#allocation2 + $0xe0] sm:$0xff] %v862
    %895 = vst [vmem:[#allocation2 + $0xe8] sm:$0xff] %v863
    %896 = vst [vmem:[#allocation2 + $0xf0] sm:$0xff] %v864
    %897 = vst [vmem:[#allocation2 + $0xf8] sm:$0xff] %v865
    // Predicated region
    $region46: #{tpu_custom_call.1} parent=1 // pred_check
      %p898 = pneg %p85
    $region47: #{tpu_custom_call.1} parent=1 // pred_check_branch
      %900 = sbr.rel (%p898) target = $region49
    $region48: #{tpu_custom_call.1} parent=1 // pred_region
      %v901 = vld [vmem:[#allocation2] sm:$0xff]
      %v902 = vld [vmem:[#allocation2 + $0x8] sm:$0xff]
      %v903 = vld [vmem:[#allocation2 + $0x10] sm:$0xff]
      %v904 = vld [vmem:[#allocation2 + $0x18] sm:$0xff]
      %v905 = vld [vmem:[#allocation2 + $0x20] sm:$0xff]
      %v906 = vld [vmem:[#allocation2 + $0x28] sm:$0xff]
      %v907 = vld [vmem:[#allocation2 + $0x30] sm:$0xff]
      %v908 = vld [vmem:[#allocation2 + $0x38] sm:$0xff]
      %v909 = vld [vmem:[#allocation2 + $0x40] sm:$0xff]
      %v910 = vld [vmem:[#allocation2 + $0x48] sm:$0xff]
      %v911 = vld [vmem:[#allocation2 + $0x50] sm:$0xff]
      %v912 = vld [vmem:[#allocation2 + $0x58] sm:$0xff]
      %v913 = vld [vmem:[#allocation2 + $0x60] sm:$0xff]
      %v914 = vld [vmem:[#allocation2 + $0x68] sm:$0xff]
      %v915 = vld [vmem:[#allocation2 + $0x70] sm:$0xff]
      %v916 = vld [vmem:[#allocation2 + $0x78] sm:$0xff]
      %v917 = vld [vmem:[#allocation2 + $0x80] sm:$0xff]
      %v918 = vld [vmem:[#allocation2 + $0x88] sm:$0xff]
      %v919 = vld [vmem:[#allocation2 + $0x90] sm:$0xff]
      %v920 = vld [vmem:[#allocation2 + $0x98] sm:$0xff]
      %v921 = vld [vmem:[#allocation2 + $0xa0] sm:$0xff]
      %v922 = vld [vmem:[#allocation2 + $0xa8] sm:$0xff]
      %v923 = vld [vmem:[#allocation2 + $0xb0] sm:$0xff]
      %v924 = vld [vmem:[#allocation2 + $0xb8] sm:$0xff]
      %v925 = vld [vmem:[#allocation2 + $0xc0] sm:$0xff]
      %v926 = vld [vmem:[#allocation2 + $0xc8] sm:$0xff]
      %v927 = vld [vmem:[#allocation2 + $0xd0] sm:$0xff]
      %v928 = vld [vmem:[#allocation2 + $0xd8] sm:$0xff]
      %v929 = vld [vmem:[#allocation2 + $0xe0] sm:$0xff]
      %v930 = vld [vmem:[#allocation2 + $0xe8] sm:$0xff]
      %v931 = vld [vmem:[#allocation2 + $0xf0] sm:$0xff]
      %v932 = vld [vmem:[#allocation2 + $0xf8] sm:$0xff]
      %v933 = vld [vmem:[#allocation11] sm:$0x1]
      %v935 = vlaneseq
      %v936 = vshrl.u32 %v935, 7
      %v937 = vsub.s32 0, %v936
      %v938 = vrot.slane %v933, %v937
      %v940 = vadd.f32 %v901, %v938
      %v941 = vadd.f32 %v902, %v938
      %v942 = vadd.f32 %v903, %v938
      %v943 = vadd.f32 %v904, %v938
      %v944 = vadd.f32 %v905, %v938
      %v945 = vadd.f32 %v906, %v938
      %v946 = vadd.f32 %v907, %v938
      %v947 = vadd.f32 %v908, %v938
      %v948 = vadd.f32 %v909, %v938
      %v949 = vadd.f32 %v910, %v938
      %v950 = vadd.f32 %v911, %v938
      %v951 = vadd.f32 %v912, %v938
      %v952 = vadd.f32 %v913, %v938
      %v953 = vadd.f32 %v914, %v938
      %v954 = vadd.f32 %v915, %v938
      %v955 = vadd.f32 %v916, %v938
      %v956 = vadd.f32 %v917, %v938
      %v957 = vadd.f32 %v918, %v938
      %v958 = vadd.f32 %v919, %v938
      %v959 = vadd.f32 %v920, %v938
      %v960 = vadd.f32 %v921, %v938
      %v961 = vadd.f32 %v922, %v938
      %v962 = vadd.f32 %v923, %v938
      %v963 = vadd.f32 %v924, %v938
      %v964 = vadd.f32 %v925, %v938
      %v965 = vadd.f32 %v926, %v938
      %v966 = vadd.f32 %v927, %v938
      %v967 = vadd.f32 %v928, %v938
      %v968 = vadd.f32 %v929, %v938
      %v969 = vadd.f32 %v930, %v938
      %v970 = vadd.f32 %v931, %v938
      %v971 = vadd.f32 %v932, %v938
      %972 = vst [vmem:[#allocation12] sm:$0xff] %v940
      %973 = vst [vmem:[#allocation12 + $0x8] sm:$0xff] %v941
      %974 = vst [vmem:[#allocation12 + $0x10] sm:$0xff] %v942
      %975 = vst [vmem:[#allocation12 + $0x18] sm:$0xff] %v943
      %976 = vst [vmem:[#allocation12 + $0x20] sm:$0xff] %v944
      %977 = vst [vmem:[#allocation12 + $0x28] sm:$0xff] %v945
      %978 = vst [vmem:[#allocation12 + $0x30] sm:$0xff] %v946
      %979 = vst [vmem:[#allocation12 + $0x38] sm:$0xff] %v947
      %980 = vst [vmem:[#allocation12 + $0x40] sm:$0xff] %v948
      %981 = vst [vmem:[#allocation12 + $0x48] sm:$0xff] %v949
      %982 = vst [vmem:[#allocation12 + $0x50] sm:$0xff] %v950
      %983 = vst [vmem:[#allocation12 + $0x58] sm:$0xff] %v951
      %984 = vst [vmem:[#allocation12 + $0x60] sm:$0xff] %v952
      %985 = vst [vmem:[#allocation12 + $0x68] sm:$0xff] %v953
      %986 = vst [vmem:[#allocation12 + $0x70] sm:$0xff] %v954
      %987 = vst [vmem:[#allocation12 + $0x78] sm:$0xff] %v955
      %988 = vst [vmem:[#allocation12 + $0x80] sm:$0xff] %v956
      %989 = vst [vmem:[#allocation12 + $0x88] sm:$0xff] %v957
      %990 = vst [vmem:[#allocation12 + $0x90] sm:$0xff] %v958
      %991 = vst [vmem:[#allocation12 + $0x98] sm:$0xff] %v959
      %992 = vst [vmem:[#allocation12 + $0xa0] sm:$0xff] %v960
      %993 = vst [vmem:[#allocation12 + $0xa8] sm:$0xff] %v961
      %994 = vst [vmem:[#allocation12 + $0xb0] sm:$0xff] %v962
      %995 = vst [vmem:[#allocation12 + $0xb8] sm:$0xff] %v963
      %996 = vst [vmem:[#allocation12 + $0xc0] sm:$0xff] %v964
      %997 = vst [vmem:[#allocation12 + $0xc8] sm:$0xff] %v965
      %998 = vst [vmem:[#allocation12 + $0xd0] sm:$0xff] %v966
      %999 = vst [vmem:[#allocation12 + $0xd8] sm:$0xff] %v967
      %1000 = vst [vmem:[#allocation12 + $0xe0] sm:$0xff] %v968
      %1001 = vst [vmem:[#allocation12 + $0xe8] sm:$0xff] %v969
      %1002 = vst [vmem:[#allocation12 + $0xf0] sm:$0xff] %v970
      %1003 = vst [vmem:[#allocation12 + $0xf8] sm:$0xff] %v971
    $region49: #{tpu_custom_call.1} parent=1 // pred_fallthru
      _
    // Predicated region
    $region50: #{tpu_custom_call.1} parent=1 // pred_check
      _
    $region51: #{tpu_custom_call.1} parent=1 // pred_check_branch
      %1005 = sbr.rel (0) target = $region53
    $region52: #{tpu_custom_call.1} parent=1 // pred_region
      %s1007 = ssub.s32 4096, 4096
      %1008 = vsyncadd [#allocation5], %s1007
      %s1009 = sshll.u32 [#allocation12], 4
      %s1010 = int_to_ptr.vmem [resolvable:$true] %s1009
      %1015 = dma.vmem_to_hbm [thread:$0]  %s1010, 4096, %s5, [#allocation5], 128, 128, 8
    $region53: #{tpu_custom_call.1} parent=1 // pred_fallthru
      _
    // Predicated region
    $region54: #{tpu_custom_call.1} parent=1 // pred_check
      _
    $region55: #{tpu_custom_call.1} parent=1 // pred_check_branch
      %1017 = sbr.rel (0) target = $region57
    $region56: #{tpu_custom_call.1} parent=1 // pred_region
      %1018 = dma.done [#allocation5], 4096
    $region57: #{tpu_custom_call.1} parent=1 // pred_fallthru
      _
    %1019 = vsyncpa [#allocation4], 1
    %1020 = vsyncpa [#allocation7], 1
    %1021 = vsyncpa [#allocation10], 1
    %1022 = vsyncpa [#allocation5], 1

</llo_original>
